<compile_context>
chip_gen: v7x
topology: tpu7x:2x2x1
jax: 0.10.0
libtpu: 0.0.40
codegen_flags: <defaults>
</compile_context>

<pallas_src>
import jax
import jax.numpy as jnp
from jax import lax
from jax.experimental import pallas as pl
from jax.experimental.pallas import tpu as pltpu


def _style_gather_kernel(ids_ref, bank_ref, out_ref):
    """One grid step: gather TB bank rows into a dense (TB, style_dim) tile.

    ids_ref  : VMEM, (TB, 1) int32 ids for this tile
    bank_ref : VMEM, (num_styles, style_dim) full style bank (resident block)
    out_ref  : VMEM, (TB, style_dim) output tile
    """
    tb = out_ref.shape[0]
    num_styles = bank_ref.shape[0]

    ids = ids_ref[...]                                            # (TB, 1)
    col = lax.broadcasted_iota(jnp.int32, (tb, num_styles), 1)    # (TB, S)
    onehot = (ids == col).astype(bank_ref.dtype)                  # exact 1/0

    acc = jnp.dot(onehot, bank_ref[...],
                  preferred_element_type=jnp.float32)             # MXU gather
    out_ref[...] = acc.astype(out_ref.dtype)


def _style_bank_lookup_pallas(style_bank: jax.Array,
                              ids_pad: jax.Array,
                              tb: int) -> jax.Array:
    num_styles, style_dim = style_bank.shape
    n_pad = ids_pad.shape[0]
    assert n_pad % tb == 0 and tb % 8 == 0

    ids_2d = ids_pad.reshape(n_pad, 1)

    return pl.pallas_call(
        _style_gather_kernel,
        out_shape=jax.ShapeDtypeStruct((n_pad, style_dim), style_bank.dtype),
        grid=(n_pad // tb,),
        in_specs=[
            # ids: one (TB, 1) tile per grid step.
            pl.BlockSpec((tb, 1), lambda i: (i, 0)),
            # Whole bank resident in VMEM, same block for every grid step.
            pl.BlockSpec((num_styles, style_dim), lambda i: (0, 0)),
        ],
        out_specs=pl.BlockSpec((tb, style_dim), lambda i: (i, 0)),
        compiler_params=pltpu.CompilerParams(
            # Disjoint output tiles per step -> genuinely parallel grid axis.
            dimension_semantics=("parallel",),
        ),
    )(ids_2d, style_bank)


def style_bank_lookup(style_bank: jax.Array,
                      style_ids: jax.Array,
                      *,
                      block_rows: int = 128,
                      min_pallas_rows: int = 64) -> jax.Array:
    """Pallas equivalent of `style_bank[style_ids]` (forward of StyleBank)."""
    num_styles, style_dim = style_bank.shape
    (n,) = style_ids.shape

    # Clamp ids so an out-of-range id can never select a padded/garbage row.
    ids = jnp.clip(style_ids.astype(jnp.int32), 0, num_styles - 1)

    itemsize = jnp.dtype(style_bank.dtype).itemsize
    bank_bytes = num_styles * style_dim * itemsize
    vmem_budget = 24 * 1024 * 1024  # stay well under the 32 MiB scoped default

    # Tiny batches (launch cost dominates) or a bank that cannot sit resident
    # in VMEM: XLA's native gather is the right tool.
    if n < min_pallas_rows or 2 * bank_bytes > vmem_budget:
        return jnp.take(style_bank, ids, axis=0)

    # Per-row VMEM cost: double-buffered output row + double-buffered ids row
    # (padded to 128 lanes) + the in-kernel one-hot row.
    per_row_bytes = (2 * style_dim * itemsize
                     + 2 * 128 * 4
                     + num_styles * max(itemsize, 4))
    max_tb = max(8, (vmem_budget - 2 * bank_bytes) // per_row_bytes)
    tb = max(8, (min(block_rows, max_tb, max(n, 8)) // 8) * 8)

    # Pad n up to a multiple of TB so every output block is sublane-dense.
    n_pad = pl.cdiv(n, tb) * tb
    ids_pad = jnp.pad(ids, (0, n_pad - n))  # pad value 0 is a valid row

    out = _style_bank_lookup_pallas(style_bank, ids_pad, tb)
    return out[:n]


if __name__ == "__main__":
    num_styles = 8
    style_dim = 128     # lane-dense last dim (multiple of 128)
    batch = 60          # deliberately NOT a multiple of the block size (tests padding)

    key = jax.random.PRNGKey(0)
    k_bank, k_ids = jax.random.split(key)

    # Deterministic "parameter" init, mirroring torch.randn(num_styles, style_dim).
    style_bank = jax.random.normal(k_bank, (num_styles, style_dim), dtype=jnp.float32)
    style_ids = jax.random.randint(k_ids, (batch,), 0, num_styles, dtype=jnp.int32)

    # Pallas path (batched grid, VMEM-resident bank, one-hot MXU gather).
    out = style_bank_lookup(style_bank, style_ids,
                            block_rows=16, min_pallas_rows=8)
    out = jax.block_until_ready(out)

    ref = style_bank[style_ids]
    assert out.shape == (batch, style_dim)
    assert out.dtype == style_bank.dtype
    assert jnp.array_equal(out, ref), "Pallas gather mismatch vs reference"

    # Tiny-batch fallback path (plain jnp.take) also matches.
    small_ids = style_ids[:4]
    out_small = jax.block_until_ready(style_bank_lookup(style_bank, small_ids))
    assert jnp.array_equal(out_small, style_bank[small_ids])

    print("KERNEL_OK")
</pallas_src>

<mosaic_0001>
module attributes {stable_mosaic.version = 11 : i64} {
  func.func @_style_gather_kernel(%arg0: i32, %arg1: memref<16x1xi32, #tpu.memory_space<vmem>>, %arg2: memref<8x128xf32, #tpu.memory_space<vmem>>, %arg3: memref<16x128xf32, #tpu.memory_space<vmem>>) attributes {dimension_semantics = [#tpu.dimension_semantics<parallel>], iteration_bounds = array<i64: 4>, scalar_prefetch = 0 : i64, scratch_operands = 0 : i64, tpu.core_type = #tpu.core_type<tc>, window_params = [{transform_indices = @transform_0, window_bounds = array<i64: 16, 1>}, {pipeline_mode = #tpu.pipeline_mode<synchronous>, transform_indices = @transform_1, window_bounds = array<i64: 8, 128>}, {transform_indices = @transform_2, window_bounds = array<i64: 16, 128>}]} {
    %c0 = arith.constant 0 : index
    %c0_0 = arith.constant 0 : index
    %0 = vector.load %arg1[%c0, %c0_0] : memref<16x1xi32, #tpu.memory_space<vmem>>, vector<16x1xi32>
    %1 = tpu.iota {dimensions = array<i32: 1>} : vector<16x8xi32>
    %2 = vector.broadcast %0 : vector<16x1xi32> to vector<16x8xi32>
    %3 = arith.cmpi eq, %2, %1 : vector<16x8xi32>
    %4 = arith.extui %3 : vector<16x8xi1> to vector<16x8xi32>
    %5 = arith.sitofp %4 : vector<16x8xi32> to vector<16x8xf32>
    %c0_1 = arith.constant 0 : index
    %c0_2 = arith.constant 0 : index
    %6 = vector.load %arg2[%c0_1, %c0_2] : memref<8x128xf32, #tpu.memory_space<vmem>>, vector<8x128xf32>
    %cst = arith.constant dense<0.000000e+00> : vector<16x128xf32>
    %7 = tpu.matmul %5, %6, %cst {dimension_numbers = #tpu.dot_dimension_numbers<[1], [0], [0], [1], [0, 0, 1, 1], [], []>} : vector<16x8xf32>, vector<8x128xf32>, vector<16x128xf32> -> vector<16x128xf32>
    %c0_3 = arith.constant 0 : index
    %c0_4 = arith.constant 0 : index
    %8 = vector.load %arg3[%c0_3, %c0_4] : memref<16x128xf32, #tpu.memory_space<vmem>>, vector<16x128xf32>
    tpu.vector_store %arg3[%c0_3, %c0_4], %7 {strides = array<i32>} : memref<16x128xf32, #tpu.memory_space<vmem>>, vector<16x128xf32>,
    return
  }
  func.func @transform_0(%arg0: i32) -> (i32, i32) {
    %c0_i32 = arith.constant 0 : i32
    %c0_i32_0 = arith.constant 0 : i32
    return %arg0, %c0_i32 : i32, i32
  }
  func.func @transform_1(%arg0: i32) -> (i32, i32) {
    %c0_i32 = arith.constant 0 : i32
    %c0_i32_0 = arith.constant 0 : i32
    %c0_i32_1 = arith.constant 0 : i32
    return %c0_i32, %c0_i32_0 : i32, i32
  }
  func.func @transform_2(%arg0: i32) -> (i32, i32) {
    %c0_i32 = arith.constant 0 : i32
    %c0_i32_0 = arith.constant 0 : i32
    return %arg0, %c0_i32 : i32, i32
  }
}

</mosaic_0001>

<llo_original>
// kernel: tpu_custom_call.1
$region0: #{tpu_custom_call.1}
  #allocation0 [shape = 'u32[]', space=smem, size = 0x4, offset = 0x4, fixed_abs, tag = 'smem constant byte address 0x4 - core index']
  #allocation1 [shape = 'u32[144,128]{1,0:T(1,128)}', space=vmem, size = 0x12000, scoped, tag = 'internal scratch']
  %s0 = inlined_call_operand.vmem [shape: s32[64,1], index: 0, kind: input, shape index: {}]
  %s1 = inlined_call_operand.vmem [shape: f32[8,128], index: 1, kind: input, shape index: {}]
  %s2 = inlined_call_operand.hbm [shape: f32[64,128], index: 2, kind: output, shape index: {}]
  %s3 = sld [smem:[#allocation0]]
  $region41: #{tpu_custom_call.1} parent=0
    _
  %s5 = ssub.s32 1, %s3
  %s6 = scalar_select 0, %s5, %s3
  $region1: #{tpu_custom_call.1} parent=0
    #allocation2 [shape = 'u8[16384]{0}', space=vmem, size = 0x4000, scoped, tag = 'output window, operand 0']
    #allocation3 [shape = 's32[2]{0}', space=sflag, size = 0x8, scoped, tag = 'scoped memory for tpu_custom_call.1']
    %7 = vsyncpa [#allocation3], 0
    %s8 = scalar_lea.sflag [#allocation3], 1
    %9 = vsyncpa %s8, 0
    loop: start=0, step=1, limit=6
    $region2: #{tpu_custom_call.1} parent=1 // loop_pre_header
      _
    $region3: #{tpu_custom_call.1} parent=1 // loop_header
      %s11 = sphi 0, %s15
      %p12 = scmp.ge.s32.totalorder %s11, 6
      %s21 = sphi 0, %s23
      %s24 = sphi 0, %s21
      %s25 = sphi 0, %s24
      %s41 = sphi 0, %s25
      %s45 = sphi 0, %s45
      %s47 = sphi 0, %s45
      %s48 = sphi 0, %s47
      %s62 = sphi 0, %s48
      %s68 = sphi 0, %s70
      %s71 = sphi 0, %s68
      %s72 = sphi 0, %s71
      %s88 = sphi 0, %s72
    $region4: #{tpu_custom_call.1} parent=1 // loop_header_branch
      %14 = sbr.rel (%p12) target = $region8
    $region5: #{tpu_custom_call.1} parent=1 // loop_body
      %s16 = ssub.s32 %s11, 1
      %s17 = ssub.s32 %s11, 2
      %s18 = sadd.s32 %s11, 1
      %s19 = ssub.s32 %s11, %s18
      %p20 = scmp.eq.s32.totalorder %s19, 0
      %s22 = sadd.s32 %s21, 1
      %s23 = scalar_select %p20, %s21, %s22
      %p26 = pneg %p20
      %p27 = scmp.eq.s32.totalorder %s11, 3
      %p28 = por %p26, %p27
      %p29 = scmp.ne.s32.totalorder %s21, %s24
      %p30 = scmp.eq.s32.totalorder %s11, 0
      %p31 = por %p29, %p30
      %p32 = scmp.ne.s32.totalorder %s21, %s24
      %p33 = scmp.eq.s32.totalorder %s16, 3
      %p34 = por %p32, %p33
      %p35 = scmp.ne.s32.totalorder %s24, %s25
      %p36 = scmp.eq.s32.totalorder %s16, 0
      %p37 = por %p35, %p36
      %p38 = scmp.ne.s32.totalorder %s24, %s25
      %p39 = scmp.eq.s32.totalorder %s17, 3
      %p40 = por %p38, %p39
      %p42 = scmp.ne.s32.totalorder %s25, %s41
      %p43 = scmp.eq.s32.totalorder %s17, 0
      %p44 = por %p42, %p43
      %s46 = sadd.s32 %s45, 1
      %p49 = scmp.eq.s32.totalorder %s11, 3
      %p50 = scmp.ne.s32.totalorder %s45, %s47
      %p51 = scmp.eq.s32.totalorder %s11, 0
      %p52 = por %p50, %p51
      %p53 = scmp.ne.s32.totalorder %s45, %s47
      %p54 = scmp.eq.s32.totalorder %s16, 3
      %p55 = por %p53, %p54
      %p56 = scmp.ne.s32.totalorder %s47, %s48
      %p57 = scmp.eq.s32.totalorder %s16, 0
      %p58 = por %p56, %p57
      %p59 = scmp.ne.s32.totalorder %s47, %s48
      %p60 = scmp.eq.s32.totalorder %s17, 3
      %p61 = por %p59, %p60
      %p63 = scmp.ne.s32.totalorder %s48, %s62
      %p64 = scmp.eq.s32.totalorder %s17, 0
      %p65 = por %p63, %p64
      %s66 = ssub.s32 %s11, %s18
      %p67 = scmp.eq.s32.totalorder %s66, 0
      %s69 = sadd.s32 %s68, 1
      %s70 = scalar_select %p67, %s68, %s69
      %p73 = pneg %p67
      %p74 = scmp.eq.s32.totalorder %s11, 3
      %p75 = por %p73, %p74
      %p76 = scmp.ne.s32.totalorder %s68, %s71
      %p77 = scmp.eq.s32.totalorder %s11, 0
      %p78 = por %p76, %p77
      %p79 = scmp.ne.s32.totalorder %s68, %s71
      %p80 = scmp.eq.s32.totalorder %s16, 3
      %p81 = por %p79, %p80
      %p82 = scmp.ne.s32.totalorder %s71, %s72
      %p83 = scmp.eq.s32.totalorder %s16, 0
      %p84 = por %p82, %p83
      %p85 = scmp.ne.s32.totalorder %s71, %s72
      %p86 = scmp.eq.s32.totalorder %s17, 3
      %p87 = por %p85, %p86
      %p89 = scmp.ne.s32.totalorder %s72, %s88
      %p90 = scmp.eq.s32.totalorder %s17, 0
      %p91 = por %p89, %p90
      %p92 = scmp.le.s32.totalorder 1, %s11
      %p93 = scmp.lt.s32.totalorder %s11, 5
      %p94 = pnand %p92, %p93
      %p95 = pneg %p94
      // Predicated region
      $region9: #{tpu_custom_call.1} parent=5 // pred_check
        _
      $region10: #{tpu_custom_call.1} parent=5 // pred_check_branch
        %97 = sbr.rel (%p94) target = $region12
      $region11: #{tpu_custom_call.1} parent=5 // pred_region
        %s98 = ssub.s32 %s11, 1
        // Predicated region
        $region13: #{tpu_custom_call.1} parent=11 // pred_check
          %p99 = pneg %p58
        $region14: #{tpu_custom_call.1} parent=11 // pred_check_branch
          %101 = sbr.rel (%p99) target = $region16
        $region15: #{tpu_custom_call.1} parent=11 // pred_region
          _
        $region16: #{tpu_custom_call.1} parent=11 // pred_fallthru
          _
      $region12: #{tpu_custom_call.1} parent=5 // pred_fallthru
        _
      %p102 = scmp.lt.s32.totalorder %s11, 4
      // Predicated region
      $region17: #{tpu_custom_call.1} parent=5 // pred_check
        %p103 = pneg %p102
      $region18: #{tpu_custom_call.1} parent=5 // pred_check_branch
        %105 = sbr.rel (%p103) target = $region20
      $region19: #{tpu_custom_call.1} parent=5 // pred_region
        // Predicated region
        $region21: #{tpu_custom_call.1} parent=19 // pred_check
          %p106 = pneg %p31
        $region22: #{tpu_custom_call.1} parent=19 // pred_check_branch
          %108 = sbr.rel (%p106) target = $region24
        $region23: #{tpu_custom_call.1} parent=19 // pred_region
          %s109 = smul.u32 2, %s11
          %p110 = scmp.lt.s32.totalorder %s109, 7
          %s111 = scalar_select %p110, %s109, 7
          %s112 = smul.addr %s111, 8
          %s113 = scalar_lea.vmem %s0, %s112
          %s114 = smul.u32 2, %s11
        $region24: #{tpu_custom_call.1} parent=19 // pred_fallthru
          _
      $region20: #{tpu_custom_call.1} parent=5 // pred_fallthru
        _
      %p115 = scmp.le.s32.totalorder 1, %s11
      %p116 = scmp.lt.s32.totalorder %s11, 5
      %p117 = pnand %p115, %p116
      %p118 = pneg %p117
      // Predicated region
      $region25: #{tpu_custom_call.1} parent=5 // pred_check
        _
      $region26: #{tpu_custom_call.1} parent=5 // pred_check_branch
        %120 = sbr.rel (%p117) target = $region28
      $region27: #{tpu_custom_call.1} parent=5 // pred_region
        %s121 = ssub.s32 %s11, 1
        %s122 = smul.u32 2, %s16
        %p123 = scmp.lt.s32.totalorder %s122, 7
        %s124 = scalar_select %p123, %s122, 7
        %s125 = smul.addr %s124, 8
        %s126 = scalar_lea.vmem %s0, %s125
        %p127 = pneg %p37
        %p128 = pneg %p34
        %p129 = pneg %p58
        %p130 = pneg %p55
        %p131 = pneg %p84
        %p132 = pneg %p81
        %s133 = sand.u32 %s71, 1
        %s134 = scalar_lea.sflag [#allocation3], %s133
        %s135 = sand.u32 %s71, 1
        %s136 = smul.addr %s135, 16
        %s137 = scalar_lea.vmem [#allocation2], %s136
        %s138 = smul.u32 2, %s16
        %p139 = scmp.lt.s32.totalorder %s138, 7
        %s140 = scalar_select %p139, %s138, 7
        %s141 = smul.addr %s140, 8
        %s142 = scalar_lea.vmem %s0, %s141
        %s143 = smul.u32 2, %s16
        %s144 = smul.u32 2, %s16
        %v145 = vld [vmem:[%s142] sm:$0xff]
        %v146 = vld [vmem:[%s142 + $0x8] sm:$0xff]
        %v147 = vlaneseq
        %v148 = vand.u32 %v147, 127
        %149 = vset.pattern.permute.xlu0 0
        %150 = vperm.xlu0 %149, %v145
        %v151 = vpop.permute.xlu0 %150
        %152 = vset.pattern.permute.xlu0 0
        %153 = vperm.xlu0 %152, %v146
        %v154 = vpop.permute.xlu0 %153
        %vm155 = vcmp.eq.s32.totalorder %v151, %v148
        %vm156 = vcmp.eq.s32.totalorder %v154, %v148
        %v157 = vsel %vm155, 1, 0
        %v158 = vsel %vm156, 1, 0
        %v159 = vcvt.s32.f32 %v157
        %v160 = vcvt.s32.f32 %v158
        %v161 = vld [vmem:[%s1] sm:$0xff]
        %vm162 = vcmask 64512
        %v164 = vsel %vm162, %v159, 0
        %v167 = vsel %vm162, %v160, 0
        %169 = vmatprep.subr.mxu0 0.0
        %170 = vmatpush1.msra.mxu0 %v161
        %171 = vmatprep.subr.mxu0 0.0
        %172 = vmatpush1.msra.mxu0 0.0
        %173 = vmatprep.subr.mxu0 0.0
        %174 = vmatpush1.msra.mxu0 0.0
        %175 = vmatprep.subr.mxu0 0.0
        %176 = vmatpush1.msra.mxu0 0.0
        %177 = vmatprep.subr.mxu0 0.0
        %178 = vmatpush1.msra.mxu0 0.0
        %179 = vmatprep.subr.mxu0 0.0
        %180 = vmatpush1.msra.mxu0 0.0
        %181 = vmatprep.subr.mxu0 0.0
        %182 = vmatpush1.msra.mxu0 0.0
        %183 = vmatprep.subr.mxu0 0.0
        %184 = vmatpush1.msra.mxu0 0.0
        %185 = vmatprep.subr.mxu0 0.0
        %186 = vmatpush1.msra.mxu0 0.0
        %187 = vmatprep.subr.mxu0 0.0
        %188 = vmatpush1.msra.mxu0 0.0
        %189 = vmatprep.subr.mxu0 0.0
        %190 = vmatpush1.msra.mxu0 0.0
        %191 = vmatprep.subr.mxu0 0.0
        %192 = vmatpush1.msra.mxu0 0.0
        %193 = vmatprep.subr.mxu0 0.0
        %194 = vmatpush1.msra.mxu0 0.0
        %195 = vmatprep.subr.mxu0 0.0
        %196 = vmatpush1.msra.mxu0 0.0
        %197 = vmatprep.subr.mxu0 0.0
        %198 = vmatpush1.msra.mxu0 0.0
        %199 = vmatprep.subr.mxu0 0.0
        %200 = vmatpush1.msra.mxu0 0.0
        %201 = vmatprep.subr.mxu0 0.0
        %202 = vmatpush1.msra.mxu0 0.0
        %203 = vmatprep.subr.mxu0 0.0
        %204 = vmatpush1.msra.mxu0 0.0
        %205 = vmatprep.subr.mxu0 0.0
        %206 = vmatpush1.msra.mxu0 0.0
        %207 = vmatprep.subr.mxu0 0.0
        %208 = vmatpush1.msra.mxu0 0.0
        %209 = vmatprep.subr.mxu0 0.0
        %210 = vmatpush1.msra.mxu0 0.0
        %211 = vmatprep.subr.mxu0 0.0
        %212 = vmatpush1.msra.mxu0 0.0
        %213 = vmatprep.subr.mxu0 0.0
        %214 = vmatpush1.msra.mxu0 0.0
        %215 = vmatprep.subr.mxu0 0.0
        %216 = vmatpush1.msra.mxu0 0.0
        %217 = vmatprep.subr.mxu0 0.0
        %218 = vmatpush1.msra.mxu0 0.0
        %219 = vmatprep.subr.mxu0 0.0
        %220 = vmatpush1.msra.mxu0 0.0
        %221 = vmatprep.subr.mxu0 0.0
        %222 = vmatpush1.msra.mxu0 0.0
        %223 = vmatprep.subr.mxu0 0.0
        %224 = vmatpush1.msra.mxu0 0.0
        %225 = vmatprep.subr.mxu0 0.0
        %226 = vmatpush1.msra.mxu0 0.0
        %227 = vmatprep.subr.mxu0 0.0
        %228 = vmatpush1.msra.mxu0 0.0
        %229 = vmatprep.subr.mxu0 0.0
        %230 = vmatpush1.msra.mxu0 0.0
        %231 = vmatprep.subr.mxu0 0.0
        %232 = vmatpush1.msra.mxu0 0.0
        %233 = vmatprep.mubr.f32.mxu0 0.0
        %234 = vmatmul.mubr.f32.gmra.mrb[0].mxu0 %v164
        %v235 = vpop.f32.mrb[0].mxu0
        %v236 = vadd.f32 0.0, %v235
        %v237 = vpop.f32.mrb[0].mxu0
        %238 = vmatprep.mubr.f32.mxu0 0.0
        %239 = vmatmul.mubr.f32.gmra.mrb[0].mxu0 %v167
        %v240 = vpop.f32.mrb[0].mxu0
        %v241 = vadd.f32 0.0, %v240
        %v242 = vpop.f32.mrb[0].mxu0
        %243 = vdwg.mxu0
        %244 = vst [vmem:[%s137] sm:$0xff] %v236
        %245 = vst [vmem:[%s137 + $0x8] sm:$0xff] %v241
        %s246 = sand.u32 %s71, 1
        %s247 = scalar_lea.sflag [#allocation3], %s246
        %s248 = sand.u32 %s71, 1
        %s249 = smul.addr %s248, 16
        %s250 = scalar_lea.vmem [#allocation2], %s249
        // Predicated region
        $region29: #{tpu_custom_call.1} parent=27 // pred_check
          %p251 = pneg %p81
        $region30: #{tpu_custom_call.1} parent=27 // pred_check_branch
          %253 = sbr.rel (%p251) target = $region32
        $region31: #{tpu_custom_call.1} parent=27 // pred_region
          %s254 = smul.u32 2, %s16
          %s256 = ssub.s32 256, 256
          %257 = vsyncadd %s247, %s256
          %s258 = smul.addr %s254, 128
          %s259 = scalar_lea.hbm %s2, %s258
          %s260 = sshll.u32 %s250, 4
          %s261 = int_to_ptr.vmem [resolvable:$true] %s260
          %266 = dma.vmem_to_hbm [thread:$0]  %s261, 256, %s259, %s247, 128, 128, 8
        $region32: #{tpu_custom_call.1} parent=27 // pred_fallthru
          _
      $region28: #{tpu_custom_call.1} parent=5 // pred_fallthru
        _
      %p267 = scmp.le.s32.totalorder 2, %s11
      // Predicated region
      $region33: #{tpu_custom_call.1} parent=5 // pred_check
        %p268 = pneg %p267
      $region34: #{tpu_custom_call.1} parent=5 // pred_check_branch
        %270 = sbr.rel (%p268) target = $region36
      $region35: #{tpu_custom_call.1} parent=5 // pred_region
        %s271 = ssub.s32 %s11, 2
        // Predicated region
        $region37: #{tpu_custom_call.1} parent=35 // pred_check
          %p272 = pneg %p87
        $region38: #{tpu_custom_call.1} parent=35 // pred_check_branch
          %274 = sbr.rel (%p272) target = $region40
        $region39: #{tpu_custom_call.1} parent=35 // pred_region
          %s275 = sand.u32 %s72, 1
          %s276 = scalar_lea.sflag [#allocation3], %s275
          %s277 = sand.u32 %s72, 1
          %s278 = smul.addr %s277, 16
          %s279 = scalar_lea.vmem [#allocation2], %s278
          %280 = dma.done %s276, 256
        $region40: #{tpu_custom_call.1} parent=35 // pred_fallthru
          _
      $region36: #{tpu_custom_call.1} parent=5 // pred_fallthru
        _
    $region6: #{tpu_custom_call.1} parent=1 // loop_footer
      %s15 = sadd.s32 1, %s11
    $region7: #{tpu_custom_call.1} parent=1 // loop_footer_branch
      %10 = sbr.rel target = $region3
    $region8: #{tpu_custom_call.1} parent=1 // loop_exit
      _
    %281 = vsyncpa [#allocation3], 1
    %s282 = scalar_lea.sflag [#allocation3], 1
    %283 = vsyncpa %s282, 1

</llo_original>
